<compile_context>
chip_gen: v7x
topology: tpu7x:2x2x1
jax: 0.10.0
libtpu: 0.0.40
codegen_flags: <defaults>
</compile_context>

<pallas_src>
import functools

import jax
import jax.numpy as jnp
from jax.experimental import pallas as pl
from jax.experimental.pallas import tpu as pltpu


# ----------------------------------------------------------------------------
# Pallas kernels
# ----------------------------------------------------------------------------
def _conv_stats_kernel(x_ref, w_ref, mask_ref, z_ref, sum_ref, ssq_ref):
    """BN path, per-M-tile: z = Wq @ X (bias-free) + masked BN partial statistics.

    x_ref:    (K, TILE_M)    bf16   sub-pixel patch tile (M on the 128-lane axis)
    w_ref:    (C2, K)        bf16   C2 = s*s*Cout "virtual" output channels
    mask_ref: (TILE_M, s2)   f32    1.0 where the output position is real (not pad/crop)
    z_ref:    (C2, TILE_M)   bf16   conv output tile (bias-free; bias cancels under BN)
    sum_ref:  (1, C2, s2)    f32    resident partial accumulators (constant block index
    ssq_ref:  (1, C2, s2)    f32    across the inner "arbitrary" grid axis)
    """
    z = jnp.dot(w_ref[...], x_ref[...], preferred_element_type=jnp.float32)
    z_ref[...] = z.astype(z_ref.dtype)          # bf16 writeback (stats use the f32 value)

    @pl.when(pl.program_id(1) == 0)
    def _init():
        sum_ref[...] = jnp.zeros_like(sum_ref)
        ssq_ref[...] = jnp.zeros_like(ssq_ref)

    # Masked lane-reductions on the MXU (idle: K is small), not the XLU.
    m = mask_ref[...]                                               # (TILE_M, s2)
    sum_ref[...] += jnp.dot(z, m, preferred_element_type=jnp.float32).reshape(sum_ref.shape)
    ssq_ref[...] += jnp.dot(z * z, m, preferred_element_type=jnp.float32).reshape(ssq_ref.shape)


def _conv_bias_act_kernel(x_ref, w_ref, b_ref, z_ref, *, activation):
    """No-BatchNorm path: conv + bias (+ LeakyReLU) in a single pass, bf16 writeback."""
    z = jnp.dot(w_ref[...], x_ref[...], preferred_element_type=jnp.float32)
    z = z + b_ref[...]
    if activation:
        z = jnp.where(z >= 0, z, 0.2 * z)
    z_ref[...] = z.astype(z_ref.dtype)


# ----------------------------------------------------------------------------
# Forward wrapper
# ----------------------------------------------------------------------------
def conv2d_transpose_forward(x, weight, bias, gamma, beta, *, stride, kernel_size,
                             batch_norm, activation, eps=1e-6, tile_m=1024):
    """Forward of the PyTorch `conv2d_transpose` module.

    x:      (N, Cin, H, W)      NCHW, like PyTorch
    weight: (Cin, Cout, k, k)   ConvTranspose2d weight layout
    bias / gamma / beta: (Cout,)
    returns (N, Cout, Ho, Wo), Ho = (H-1)*s - 2p + k, p = (k-1)//2.

    tile_m: M tile (multiple of 128).  Default 1024; auto-halved if the double-buffered
            working set would exceed ~48 MiB (v7x VMEM headroom).
    """
    N, Cin, H, W = x.shape
    k, s = kernel_size, stride
    p = (k - 1) // 2
    Cout = weight.shape[1]
    Ho = (H - 1) * s - 2 * p + k
    Wo = (W - 1) * s - 2 * p + k
    s2 = s * s
    C2 = s2 * Cout
    assert tile_m % 128 == 0 and tile_m >= 128

    # ---- sub-pixel (pixel-shuffle) decomposition of the transposed conv ----
    #   y[n, co, s*i+rh, s*j+rw] =
    #       sum_{dh,dw,ci} x[n, ci, i+dh, j+dw] * W[ci, co, rh+p-s*dh, rw+p-s*dw]
    # i.e. one dense matmul on the compact input; no zero-inserted tensor, no im2col blow-up.
    Hi = -(-Ho // s)
    Wi = -(-Wo // s)
    d_min = -((k - 1 - p) // s)          # always <= 0
    d_max = (s - 1 + p) // s
    T = d_max - d_min + 1                # taps per spatial axis
    K = T * T * Cin
    M = N * Hi * Wi

    # ---- VMEM budget (v7x has 64 MiB physical; v5e default scoped limit is 16 MiB) ----
    def vmem_est(tm):
        def buf(r, c, b, nbuf=2):        # double-buffered, (8,128)-padded block estimate
            return nbuf * (-(-r // 8) * 8) * (-(-c // 128) * 128) * b
        est = buf(K, tm, 2) + buf(C2, K, 2) + buf(C2, tm, 2) + buf(C2, 1, 4)
        if batch_norm:
            est += buf(tm, s2, 4) + 2 * buf(C2, s2, 4)
        return est
    VMEM_BUDGET = 48 * 2 ** 20
    while vmem_est(tile_m) > VMEM_BUDGET and tile_m > 128:
        tile_m = max(128, (tile_m // 2 // 128) * 128)
    vmem_limit = int(min(60 * 2 ** 20, max(32 * 2 ** 20, 2 * vmem_est(tile_m))))

    # v7x: split the M axis over both TensorCores for the BN (stats-accumulating) pass.
    P = 2 if (batch_norm and M > tile_m) else 1
    n_tiles = -(-M // tile_m)
    n_tiles = -(-n_tiles // P) * P
    tpp = n_tiles // P
    M_pad = n_tiles * tile_m

    # ---- build the patch matrix DIRECTLY in lane-dense (K, M_pad) layout ----
    xc = jnp.transpose(x, (1, 0, 2, 3)).astype(jnp.bfloat16)       # (Cin, N, H, W)
    pad_lo = -d_min
    pad_hi_h = max(0, Hi - 1 + d_max - (H - 1))
    pad_hi_w = max(0, Wi - 1 + d_max - (W - 1))
    xp = jnp.pad(xc, ((0, 0), (0, 0), (pad_lo, pad_hi_h), (pad_lo, pad_hi_w)))
    taps = []
    for dh in range(d_min, d_max + 1):
        for dw in range(d_min, d_max + 1):
            oh, ow = dh - d_min, dw - d_min
            taps.append(xp[:, :, oh:oh + Hi, ow:ow + Wi])          # (Cin, N, Hi, Wi)
    # TODO(synk): for very large feature maps, accumulate the T*T taps inside the kernel
    # (shifted slices of one padded HBM input) instead of materializing this T*T-fold copy.
    Xt = jnp.stack(taps, axis=0).reshape(K, M)                     # (K, M) bf16, M on lanes
    Xt = jnp.pad(Xt, ((0, 0), (0, M_pad - M)))

    # Dense sub-pixel weight (C2, K).
    Wq = jnp.zeros((K, C2), jnp.float32)
    wf = weight.astype(jnp.float32)
    for di in range(T):
        for dj in range(T):
            for rh in range(s):
                for rw in range(s):
                    kh = rh + p - s * (d_min + di)
                    kw = rw + p - s * (d_min + dj)
                    if 0 <= kh < k and 0 <= kw < k:
                        r0 = (di * T + dj) * Cin
                        c0 = (rh * s + rw) * Cout
                        Wq = Wq.at[r0:r0 + Cin, c0:c0 + Cout].set(wf[:, :, kh, kw])
    Wqt = Wq.T.astype(jnp.bfloat16)                                # (C2, K)
    # TODO(synk): weight/bias blocks have constant index maps and could be single-buffered
    # (pipeline_mode=pl.Buffered(1)) to save a redundant VMEM copy on newer JAX versions.

    cost = pl.CostEstimate(
        flops=2 * M_pad * K * C2 + (4 * M_pad * s2 * C2 if batch_norm else 0),
        transcendentals=0,
        bytes_accessed=2 * K * M_pad + 2 * C2 * K + 2 * C2 * M_pad
                       + (4 * s2 * M_pad if batch_norm else 4 * C2))

    if not batch_norm:
        bias_q = jnp.tile(bias.astype(jnp.float32), s2).reshape(C2, 1)
        z_raw = pl.pallas_call(
            functools.partial(_conv_bias_act_kernel, activation=activation),
            out_shape=jax.ShapeDtypeStruct((C2, M_pad), jnp.bfloat16),
            grid=(n_tiles,),
            in_specs=[pl.BlockSpec((K, tile_m), lambda i: (0, i)),
                      pl.BlockSpec((C2, K), lambda i: (0, 0)),
                      pl.BlockSpec((C2, 1), lambda i: (0, 0))],
            out_specs=pl.BlockSpec((C2, tile_m), lambda i: (0, i)),
            compiler_params=pltpu.CompilerParams(
                dimension_semantics=("parallel",), vmem_limit_bytes=vmem_limit),
            cost_estimate=cost,
        )(Xt, Wqt, bias_q)
        y = z_raw[:, :M].astype(jnp.float32)
    else:
        # Validity mask (M_pad, s2): excludes M padding and the rows/cols cropped by the
        # pixel shuffle so statistics match BatchNorm2d over the real (N, Ho, Wo) positions.
        m_idx = jnp.arange(M_pad, dtype=jnp.int32)
        ij = m_idx % (Hi * Wi)
        i_idx = ij // Wi
        j_idx = ij % Wi
        valid_m = m_idx < M
        cols = []
        for rh in range(s):
            for rw in range(s):
                cols.append(valid_m & (s * i_idx + rh < Ho) & (s * j_idx + rw < Wo))
        mask = jnp.stack(cols, axis=1).astype(jnp.float32)          # (M_pad, s2)

        z_raw, zsum, zssq = pl.pallas_call(
            _conv_stats_kernel,
            out_shape=(jax.ShapeDtypeStruct((C2, M_pad), jnp.bfloat16),
                       jax.ShapeDtypeStruct((P, C2, s2), jnp.float32),
                       jax.ShapeDtypeStruct((P, C2, s2), jnp.float32)),
            grid=(P, tpp),
            in_specs=[pl.BlockSpec((K, tile_m), lambda pi, ti: (0, pi * tpp + ti)),
                      pl.BlockSpec((C2, K), lambda pi, ti: (0, 0)),
                      pl.BlockSpec((tile_m, s2), lambda pi, ti: (pi * tpp + ti, 0))],
            out_specs=(pl.BlockSpec((C2, tile_m), lambda pi, ti: (0, pi * tpp + ti)),
                       pl.BlockSpec((1, C2, s2), lambda pi, ti: (pi, 0, 0)),
                       pl.BlockSpec((1, C2, s2), lambda pi, ti: (pi, 0, 0))),
            compiler_params=pltpu.CompilerParams(
                dimension_semantics=("parallel", "arbitrary"),   # stats accumulate over M tiles
                vmem_limit_bytes=vmem_limit),
            cost_estimate=cost,
        )(Xt, Wqt, mask)

        # Finalize training-mode batch statistics (tiny XLA math, biased batch variance).
        # The residue "diagonal" picks the correct mask column per virtual-channel group.
        S = jnp.sum(zsum, axis=0).reshape(s2, Cout, s2)
        Q = jnp.sum(zssq, axis=0).reshape(s2, Cout, s2)
        sum_c = jnp.einsum('gcg->c', S)
        ssq_c = jnp.einsum('gcg->c', Q)
        count = N * Ho * Wo
        mean_nb = sum_c / count                       # mean of the bias-free conv output
        var = jnp.maximum(ssq_c / count - mean_nb * mean_nb, 0.0)
        rstd = jax.lax.rsqrt(var + eps)
        scale_c = gamma.astype(jnp.float32) * rstd
        shift_c = beta.astype(jnp.float32) - mean_nb * scale_c     # conv bias cancels under BN
        scale_q = jnp.tile(scale_c, s2).reshape(C2, 1)
        shift_q = jnp.tile(shift_c, s2).reshape(C2, 1)
        # TODO(synk): nn.BatchNorm2d running_mean/running_var (momentum=0.01) are not updated.

        # BN apply + LeakyReLU fuse into the pixel-shuffle epilogue below (no second Pallas pass).
        y = z_raw[:, :M].astype(jnp.float32) * scale_q + shift_q
        if activation:
            y = jnp.where(y >= 0, y, 0.2 * y)

    # ---- pure layout plumbing: pixel-shuffle back to NCHW and crop (XLA) ----
    y = y.reshape(s, s, Cout, N, Hi, Wi)
    y = jnp.transpose(y, (3, 2, 4, 0, 5, 1)).reshape(N, Cout, Hi * s, Wi * s)
    return y[:, :, :Ho, :Wo]


# ----------------------------------------------------------------------------
# Plain-JAX reference (PyTorch semantics)
# ----------------------------------------------------------------------------
def _reference(x, weight, bias, gamma, beta, *, stride, kernel_size,
               batch_norm, activation, eps=1e-6):
    k, s = kernel_size, stride
    p = (k - 1) // 2
    w_oihw = jnp.transpose(jnp.flip(weight, (2, 3)), (1, 0, 2, 3))
    y = jax.lax.conv_general_dilated(
        x.astype(jnp.float32), w_oihw.astype(jnp.float32),
        window_strides=(1, 1),
        padding=[(k - 1 - p, k - 1 - p)] * 2,
        lhs_dilation=(s, s),
        dimension_numbers=('NCHW', 'OIHW', 'NCHW'))
    y = y + bias.reshape(1, -1, 1, 1)
    if batch_norm:
        mean = jnp.mean(y, axis=(0, 2, 3), keepdims=True)
        var = jnp.mean((y - mean) ** 2, axis=(0, 2, 3), keepdims=True)
        y = (y - mean) * jax.lax.rsqrt(var + eps)
        y = y * gamma.reshape(1, -1, 1, 1) + beta.reshape(1, -1, 1, 1)
    if activation:
        y = jnp.where(y >= 0, y, 0.2 * y)
    return y


if __name__ == "__main__":
    # module config: conv2d_transpose(batchNorm=True, in_planes=4, out_planes=8,
    #                                 kernel_size=3, stride=2, activation=True)
    batch, in_planes, out_planes = 2, 4, 8
    H = W = 16
    kernel_size, stride = 3, 2

    key = jax.random.PRNGKey(0)
    kx, kw, kb, kg, kbe = jax.random.split(key, 5)
    x = jax.random.normal(kx, (batch, in_planes, H, W), jnp.float32)
    weight = 0.1 * jax.random.normal(
        kw, (in_planes, out_planes, kernel_size, kernel_size), jnp.float32)
    bias = 0.1 * jax.random.normal(kb, (out_planes,), jnp.float32)
    gamma = 1.0 + 0.1 * jax.random.normal(kg, (out_planes,), jnp.float32)
    beta = 0.1 * jax.random.normal(kbe, (out_planes,), jnp.float32)

    for bn in (True, False):
        # tile_m=128 at these tiny shapes exercises the multi-tile accumulation and the
        # 2-D (parallel, arbitrary) partial-stats path; production should use the 1024 default.
        fwd = jax.jit(functools.partial(
            conv2d_transpose_forward, stride=stride, kernel_size=kernel_size,
            batch_norm=bn, activation=True, tile_m=128))
        out = jax.block_until_ready(fwd(x, weight, bias, gamma, beta))
        ref = _reference(x, weight, bias, gamma, beta, stride=stride,
                         kernel_size=kernel_size, batch_norm=bn, activation=True)
        assert out.shape == ref.shape, (out.shape, ref.shape)
        err = float(jnp.max(jnp.abs(out - ref)))
        merr = float(jnp.mean(jnp.abs(out - ref)))
        # bf16 matmul operands + bf16 intermediate storage, amplified by BN normalization.
        tol_max = 1.2e-1 if bn else 5e-2
        tol_mean = 2.5e-2 if bn else 1e-2
        assert err < tol_max, (bn, err)
        assert merr < tol_mean, (bn, merr)

    print("KERNEL_OK")
</pallas_src>

<mosaic_0001>
module attributes {stable_mosaic.version = 11 : i64} {
  func.func @_conv_stats_kernel(%arg0: i32, %arg1: i32, %arg2: memref<16x128xbf16, #tpu.memory_space<vmem>>, %arg3: memref<32x16xbf16, #tpu.memory_space<vmem>>, %arg4: memref<128x4xf32, #tpu.memory_space<vmem>>, %arg5: memref<32x128xbf16, #tpu.memory_space<vmem>>, %arg6: memref<1x32x4xf32, #tpu.memory_space<vmem>>, %arg7: memref<1x32x4xf32, #tpu.memory_space<vmem>>) attributes {dimension_semantics = [#tpu.dimension_semantics<parallel>, #tpu.dimension_semantics<arbitrary>], iteration_bounds = array<i64: 2, 2>, scalar_prefetch = 0 : i64, scratch_operands = 0 : i64, tpu.core_type = #tpu.core_type<tc>, window_params = [{transform_indices = @transform_0, window_bounds = array<i64: 16, 128>}, {pipeline_mode = #tpu.pipeline_mode<synchronous>, transform_indices = @transform_1, window_bounds = array<i64: 32, 16>}, {transform_indices = @transform_2, window_bounds = array<i64: 128, 4>}, {transform_indices = @transform_3, window_bounds = array<i64: 32, 128>}, {transform_indices = @transform_4, window_bounds = array<i64: 1, 32, 4>}, {transform_indices = @transform_5, window_bounds = array<i64: 1, 32, 4>}]} {
    %c0 = arith.constant 0 : index
    %c0_0 = arith.constant 0 : index
    %0 = vector.load %arg3[%c0, %c0_0] : memref<32x16xbf16, #tpu.memory_space<vmem>>, vector<32x16xbf16>
    %c0_1 = arith.constant 0 : index
    %c0_2 = arith.constant 0 : index
    %1 = vector.load %arg2[%c0_1, %c0_2] : memref<16x128xbf16, #tpu.memory_space<vmem>>, vector<16x128xbf16>
    %cst = arith.constant dense<0.000000e+00> : vector<32x128xf32>
    %2 = tpu.matmul %0, %1, %cst {dimension_numbers = #tpu.dot_dimension_numbers<[1], [0], [0], [1], [0, 0, 1, 1], [], []>} : vector<32x16xbf16>, vector<16x128xbf16>, vector<32x128xf32> -> vector<32x128xf32>
    %3 = arith.truncf %2 : vector<32x128xf32> to vector<32x128xbf16>
    %c0_3 = arith.constant 0 : index
    %c0_4 = arith.constant 0 : index
    %4 = vector.load %arg5[%c0_3, %c0_4] : memref<32x128xbf16, #tpu.memory_space<vmem>>, vector<32x128xbf16>
    tpu.vector_store %arg5[%c0_3, %c0_4], %3 {strides = array<i32>} : memref<32x128xbf16, #tpu.memory_space<vmem>>, vector<32x128xbf16>,
    %c0_i32 = arith.constant 0 : i32
    %5 = arith.cmpi eq, %arg1, %c0_i32 : i32
    %6 = arith.extui %5 : i1 to i32
    %c0_i32_5 = arith.constant 0 : i32
    %7 = arith.cmpi ne, %6, %c0_i32_5 : i32
    scf.if %7 {
      %cst_22 = arith.constant 0.000000e+00 : f32
      %20 = vector.broadcast %cst_22 : f32 to vector<1x32x4xf32>
      %c0_23 = arith.constant 0 : index
      %c0_24 = arith.constant 0 : index
      %c0_25 = arith.constant 0 : index
      %21 = vector.load %arg6[%c0_23, %c0_24, %c0_25] : memref<1x32x4xf32, #tpu.memory_space<vmem>>, vector<1x32x4xf32>
      tpu.vector_store %arg6[%c0_23, %c0_24, %c0_25], %20 {strides = array<i32>} : memref<1x32x4xf32, #tpu.memory_space<vmem>>, vector<1x32x4xf32>,
      %cst_26 = arith.constant 0.000000e+00 : f32
      %22 = vector.broadcast %cst_26 : f32 to vector<1x32x4xf32>
      %c0_27 = arith.constant 0 : index
      %c0_28 = arith.constant 0 : index
      %c0_29 = arith.constant 0 : index
      %23 = vector.load %arg7[%c0_27, %c0_28, %c0_29] : memref<1x32x4xf32, #tpu.memory_space<vmem>>, vector<1x32x4xf32>
      tpu.vector_store %arg7[%c0_27, %c0_28, %c0_29], %22 {strides = array<i32>} : memref<1x32x4xf32, #tpu.memory_space<vmem>>, vector<1x32x4xf32>,
    } else {
    }
    %c0_6 = arith.constant 0 : index
    %c0_7 = arith.constant 0 : index
    %8 = vector.load %arg4[%c0_6, %c0_7] : memref<128x4xf32, #tpu.memory_space<vmem>>, vector<128x4xf32>
    %c0_8 = arith.constant 0 : index
    %c0_9 = arith.constant 0 : index
    %c0_10 = arith.constant 0 : index
    %9 = vector.load %arg6[%c0_8, %c0_9, %c0_10] : memref<1x32x4xf32, #tpu.memory_space<vmem>>, vector<1x32x4xf32>
    %cst_11 = arith.constant dense<0.000000e+00> : vector<32x4xf32>
    %10 = tpu.matmul %2, %8, %cst_11 {dimension_numbers = #tpu.dot_dimension_numbers<[1], [0], [0], [1], [0, 0, 1, 1], [], []>} : vector<32x128xf32>, vector<128x4xf32>, vector<32x4xf32> -> vector<32x4xf32>
    %11 = vector.shape_cast %10 : vector<32x4xf32> to vector<1x32x4xf32>
    %12 = arith.addf %9, %11 : vector<1x32x4xf32>
    %c0_12 = arith.constant 0 : index
    %c0_13 = arith.constant 0 : index
    %c0_14 = arith.constant 0 : index
    %13 = vector.load %arg6[%c0_12, %c0_13, %c0_14] : memref<1x32x4xf32, #tpu.memory_space<vmem>>, vector<1x32x4xf32>
    tpu.vector_store %arg6[%c0_12, %c0_13, %c0_14], %12 {strides = array<i32>} : memref<1x32x4xf32, #tpu.memory_space<vmem>>, vector<1x32x4xf32>,
    %c0_15 = arith.constant 0 : index
    %c0_16 = arith.constant 0 : index
    %c0_17 = arith.constant 0 : index
    %14 = vector.load %arg7[%c0_15, %c0_16, %c0_17] : memref<1x32x4xf32, #tpu.memory_space<vmem>>, vector<1x32x4xf32>
    %15 = arith.mulf %2, %2 : vector<32x128xf32>
    %cst_18 = arith.constant dense<0.000000e+00> : vector<32x4xf32>
    %16 = tpu.matmul %15, %8, %cst_18 {dimension_numbers = #tpu.dot_dimension_numbers<[1], [0], [0], [1], [0, 0, 1, 1], [], []>} : vector<32x128xf32>, vector<128x4xf32>, vector<32x4xf32> -> vector<32x4xf32>
    %17 = vector.shape_cast %16 : vector<32x4xf32> to vector<1x32x4xf32>
    %18 = arith.addf %14, %17 : vector<1x32x4xf32>
    %c0_19 = arith.constant 0 : index
    %c0_20 = arith.constant 0 : index
    %c0_21 = arith.constant 0 : index
    %19 = vector.load %arg7[%c0_19, %c0_20, %c0_21] : memref<1x32x4xf32, #tpu.memory_space<vmem>>, vector<1x32x4xf32>
    tpu.vector_store %arg7[%c0_19, %c0_20, %c0_21], %18 {strides = array<i32>} : memref<1x32x4xf32, #tpu.memory_space<vmem>>, vector<1x32x4xf32>,
    return
  }
  func.func @transform_0(%arg0: i32, %arg1: i32) -> (i32, i32) {
    %c2_i32 = arith.constant 2 : i32
    %0 = arith.muli %arg0, %c2_i32 : i32
    %1 = arith.addi %0, %arg1 : i32
    %c0_i32 = arith.constant 0 : i32
    %c0_i32_0 = arith.constant 0 : i32
    return %c0_i32, %1 : i32, i32
  }
  func.func @transform_1(%arg0: i32, %arg1: i32) -> (i32, i32) {
    %c0_i32 = arith.constant 0 : i32
    %c0_i32_0 = arith.constant 0 : i32
    %c0_i32_1 = arith.constant 0 : i32
    return %c0_i32, %c0_i32_0 : i32, i32
  }
  func.func @transform_2(%arg0: i32, %arg1: i32) -> (i32, i32) {
    %c2_i32 = arith.constant 2 : i32
    %0 = arith.muli %arg0, %c2_i32 : i32
    %1 = arith.addi %0, %arg1 : i32
    %c0_i32 = arith.constant 0 : i32
    %c0_i32_0 = arith.constant 0 : i32
    return %1, %c0_i32 : i32, i32
  }
  func.func @transform_3(%arg0: i32, %arg1: i32) -> (i32, i32) {
    %c2_i32 = arith.constant 2 : i32
    %0 = arith.muli %arg0, %c2_i32 : i32
    %1 = arith.addi %0, %arg1 : i32
    %c0_i32 = arith.constant 0 : i32
    %c0_i32_0 = arith.constant 0 : i32
    return %c0_i32, %1 : i32, i32
  }
  func.func @transform_4(%arg0: i32, %arg1: i32) -> (i32, i32, i32) {
    %c0_i32 = arith.constant 0 : i32
    %c0_i32_0 = arith.constant 0 : i32
    %c0_i32_1 = arith.constant 0 : i32
    return %arg0, %c0_i32, %c0_i32_0 : i32, i32, i32
  }
  func.func @transform_5(%arg0: i32, %arg1: i32) -> (i32, i32, i32) {
    %c0_i32 = arith.constant 0 : i32
    %c0_i32_0 = arith.constant 0 : i32
    %c0_i32_1 = arith.constant 0 : i32
    return %arg0, %c0_i32, %c0_i32_0 : i32, i32, i32
  }
}

</mosaic_0001>

<llo_original>
// kernel: tile.18
$region0: #{tile.18}
  #allocation0 [shape = 's32[1]{0}', space=sflag, size = 0x4, scoped, tag = 'scoped memory for tile.18']
  %s0 = inlined_call_operand.vmem [shape: f32[8], index: 0, kind: input, shape index: {}]
  %s1 = inlined_call_operand.vmem [shape: f32[4,8], index: 1, kind: output, shape index: {}]
  // Predicated region
  $region2: #{tile.18} parent=0 // pred_check
    _
  $region3: #{tile.18} parent=0 // pred_check_branch
    %3 = sbr.rel (0) target = $region5
  $region4: #{tile.18} parent=0 // pred_region
    _
  $region5: #{tile.18} parent=0 // pred_fallthru
    _
  %v4 = vld [vmem:[%s0] ss:$0 sm:$0xff]
  %5 = vst [vmem:[%s1] sm:$0xf] %v4

// kernel: conv2d_transpose_forward.1
$region0: #{conv2d_transpose_forward.1}
  #allocation0 [shape = 'u32[]', space=smem, size = 0x4, offset = 0x4, fixed_abs, tag = 'smem constant byte address 0x4 - core index']
  #allocation1 [shape = 'u32[144,128]{1,0:T(1,128)}', space=vmem, size = 0x12000, scoped, tag = 'internal scratch']
  %s0 = inlined_call_operand.vmem [shape: bf16[16,512], index: 0, kind: input, shape index: {}]
  %s1 = inlined_call_operand.vmem [shape: bf16[32,16], index: 1, kind: input, shape index: {}]
  %s2 = inlined_call_operand.vmem [shape: f32[512,4], index: 2, kind: input, shape index: {}]
  %s3 = inlined_call_operand.vmem [shape: bf16[32,512], index: 3, kind: output, shape index: {0}]
  %s4 = inlined_call_operand.vmem [shape: f32[2,32,4], index: 4, kind: output, shape index: {1}]
  %s5 = inlined_call_operand.vmem [shape: f32[2,32,4], index: 5, kind: output, shape index: {2}]
  %6 = xla_tuple %s3, %s4, %s5
  %s7 = sld [smem:[#allocation0]]
  $region143: #{conv2d_transpose_forward.1} parent=0
    _
  %s9 = ssub.s32 1, %s7
  %s10 = scalar_select 0, %s9, %s7
  $region1: #{conv2d_transpose_forward.1} parent=0
    #allocation2 [shape = 'u8[8192]{0}', space=vmem, size = 0x2000, scoped, tag = 'input window, operand 0']
    #allocation3 [shape = 'u8[16384]{0}', space=vmem, size = 0x4000, scoped, tag = 'output window, operand 0']
    loop: start=0, step=1, limit=6
    $region2: #{conv2d_transpose_forward.1} parent=1 // loop_pre_header
      _
    $region3: #{conv2d_transpose_forward.1} parent=1 // loop_header
      %s12 = sphi 0, %s16
      %p13 = scmp.ge.s32.totalorder %s12, 6
      %s19 = sphi 0, %s31
      %s20 = sphi 0, %s27
      %s21 = sphi 0, %s19
      %s22 = sphi 0, %s20
      %s23 = sphi 0, %s21
      %s24 = sphi 0, %s22
      %s38 = sphi 0, %s40
      %s41 = sphi 0, %s38
      %s42 = sphi 0, %s41
      %s58 = sphi 0, %s42
      %s62 = sphi 0, %s62
      %s64 = sphi 0, %s62
      %s65 = sphi 0, %s64
      %s79 = sphi 0, %s65
      %s89 = sphi 0, %s91
      %s92 = sphi 0, %s89
      %s93 = sphi 0, %s92
      %s109 = sphi 0, %s93
      %s119 = sphi 0, %s121
      %s122 = sphi 0, %s119
      %s123 = sphi 0, %s122
      %s139 = sphi 0, %s123
      %s145 = sphi 0, %s147
      %s148 = sphi 0, %s145
      %s149 = sphi 0, %s148
      %s165 = sphi 0, %s149
      %s171 = sphi 0, %s173
      %s174 = sphi 0, %s171
      %s175 = sphi 0, %s174
      %s191 = sphi 0, %s175
    $region4: #{conv2d_transpose_forward.1} parent=1 // loop_header_branch
      %15 = sbr.rel (%p13) target = $region8
    $region5: #{conv2d_transpose_forward.1} parent=1 // loop_body
      %s17 = ssub.s32 %s12, 1
      %s18 = ssub.s32 %s12, 2
      %s25 = sadd.s32 1, %s20
      %p26 = scmp.ge.s32.totalorder %s25, 2
      %s27 = scalar_select %p26, 0, %s25
      %s28 = sadd.s32 1, %s19
      %s29 = scalar_select %p26, %s28, %s19
      %p30 = scmp.ge.s32.totalorder %s29, 2
      %s31 = scalar_select %p30, 0, %s29
      %s32 = smul.u32 %s19, 2
      %s33 = sadd.s32 %s32, %s20
      %s34 = smul.u32 %s31, 2
      %s35 = sadd.s32 %s34, %s27
      %s36 = ssub.s32 %s33, %s35
      %p37 = scmp.eq.s32.totalorder %s36, 0
      %s39 = sadd.s32 %s38, 1
      %s40 = scalar_select %p37, %s38, %s39
      %p43 = pneg %p37
      %p44 = scmp.eq.s32.totalorder %s12, 3
      %p45 = por %p43, %p44
      %p46 = scmp.ne.s32.totalorder %s38, %s41
      %p47 = scmp.eq.s32.totalorder %s12, 0
      %p48 = por %p46, %p47
      %p49 = scmp.ne.s32.totalorder %s38, %s41
      %p50 = scmp.eq.s32.totalorder %s17, 3
      %p51 = por %p49, %p50
      %p52 = scmp.ne.s32.totalorder %s41, %s42
      %p53 = scmp.eq.s32.totalorder %s17, 0
      %p54 = por %p52, %p53
      %p55 = scmp.ne.s32.totalorder %s41, %s42
      %p56 = scmp.eq.s32.totalorder %s18, 3
      %p57 = por %p55, %p56
      %p59 = scmp.ne.s32.totalorder %s42, %s58
      %p60 = scmp.eq.s32.totalorder %s18, 0
      %p61 = por %p59, %p60
      %s63 = sadd.s32 %s62, 1
      %p66 = scmp.eq.s32.totalorder %s12, 3
      %p67 = scmp.ne.s32.totalorder %s62, %s64
      %p68 = scmp.eq.s32.totalorder %s12, 0
      %p69 = por %p67, %p68
      %p70 = scmp.ne.s32.totalorder %s62, %s64
      %p71 = scmp.eq.s32.totalorder %s17, 3
      %p72 = por %p70, %p71
      %p73 = scmp.ne.s32.totalorder %s64, %s65
      %p74 = scmp.eq.s32.totalorder %s17, 0
      %p75 = por %p73, %p74
      %p76 = scmp.ne.s32.totalorder %s64, %s65
      %p77 = scmp.eq.s32.totalorder %s18, 3
      %p78 = por %p76, %p77
      %p80 = scmp.ne.s32.totalorder %s65, %s79
      %p81 = scmp.eq.s32.totalorder %s18, 0
      %p82 = por %p80, %p81
      %s83 = smul.u32 %s19, 2
      %s84 = sadd.s32 %s83, %s20
      %s85 = smul.u32 %s31, 2
      %s86 = sadd.s32 %s85, %s27
      %s87 = ssub.s32 %s84, %s86
      %p88 = scmp.eq.s32.totalorder %s87, 0
      %s90 = sadd.s32 %s89, 1
      %s91 = scalar_select %p88, %s89, %s90
      %p94 = pneg %p88
      %p95 = scmp.eq.s32.totalorder %s12, 3
      %p96 = por %p94, %p95
      %p97 = scmp.ne.s32.totalorder %s89, %s92
      %p98 = scmp.eq.s32.totalorder %s12, 0
      %p99 = por %p97, %p98
      %p100 = scmp.ne.s32.totalorder %s89, %s92
      %p101 = scmp.eq.s32.totalorder %s17, 3
      %p102 = por %p100, %p101
      %p103 = scmp.ne.s32.totalorder %s92, %s93
      %p104 = scmp.eq.s32.totalorder %s17, 0
      %p105 = por %p103, %p104
      %p106 = scmp.ne.s32.totalorder %s92, %s93
      %p107 = scmp.eq.s32.totalorder %s18, 3
      %p108 = por %p106, %p107
      %p110 = scmp.ne.s32.totalorder %s93, %s109
      %p111 = scmp.eq.s32.totalorder %s18, 0
      %p112 = por %p110, %p111
      %s113 = smul.u32 %s19, 2
      %s114 = sadd.s32 %s113, %s20
      %s115 = smul.u32 %s31, 2
      %s116 = sadd.s32 %s115, %s27
      %s117 = ssub.s32 %s114, %s116
      %p118 = scmp.eq.s32.totalorder %s117, 0
      %s120 = sadd.s32 %s119, 1
      %s121 = scalar_select %p118, %s119, %s120
      %p124 = pneg %p118
      %p125 = scmp.eq.s32.totalorder %s12, 3
      %p126 = por %p124, %p125
      %p127 = scmp.ne.s32.totalorder %s119, %s122
      %p128 = scmp.eq.s32.totalorder %s12, 0
      %p129 = por %p127, %p128
      %p130 = scmp.ne.s32.totalorder %s119, %s122
      %p131 = scmp.eq.s32.totalorder %s17, 3
      %p132 = por %p130, %p131
      %p133 = scmp.ne.s32.totalorder %s122, %s123
      %p134 = scmp.eq.s32.totalorder %s17, 0
      %p135 = por %p133, %p134
      %p136 = scmp.ne.s32.totalorder %s122, %s123
      %p137 = scmp.eq.s32.totalorder %s18, 3
      %p138 = por %p136, %p137
      %p140 = scmp.ne.s32.totalorder %s123, %s139
      %p141 = scmp.eq.s32.totalorder %s18, 0
      %p142 = por %p140, %p141
      %s143 = ssub.s32 %s19, %s31
      %p144 = scmp.eq.s32.totalorder %s143, 0
      %s146 = sadd.s32 %s145, 1
      %s147 = scalar_select %p144, %s145, %s146
      %p150 = pneg %p144
      %p151 = scmp.eq.s32.totalorder %s12, 3
      %p152 = por %p150, %p151
      %p153 = scmp.ne.s32.totalorder %s145, %s148
      %p154 = scmp.eq.s32.totalorder %s12, 0
      %p155 = por %p153, %p154
      %p156 = scmp.ne.s32.totalorder %s145, %s148
      %p157 = scmp.eq.s32.totalorder %s17, 3
      %p158 = por %p156, %p157
      %p159 = scmp.ne.s32.totalorder %s148, %s149
      %p160 = scmp.eq.s32.totalorder %s17, 0
      %p161 = por %p159, %p160
      %p162 = scmp.ne.s32.totalorder %s148, %s149
      %p163 = scmp.eq.s32.totalorder %s18, 3
      %p164 = por %p162, %p163
      %p166 = scmp.ne.s32.totalorder %s149, %s165
      %p167 = scmp.eq.s32.totalorder %s18, 0
      %p168 = por %p166, %p167
      %s169 = ssub.s32 %s19, %s31
      %p170 = scmp.eq.s32.totalorder %s169, 0
      %s172 = sadd.s32 %s171, 1
      %s173 = scalar_select %p170, %s171, %s172
      %p176 = pneg %p170
      %p177 = scmp.eq.s32.totalorder %s12, 3
      %p178 = por %p176, %p177
      %p179 = scmp.ne.s32.totalorder %s171, %s174
      %p180 = scmp.eq.s32.totalorder %s12, 0
      %p181 = por %p179, %p180
      %p182 = scmp.ne.s32.totalorder %s171, %s174
      %p183 = scmp.eq.s32.totalorder %s17, 3
      %p184 = por %p182, %p183
      %p185 = scmp.ne.s32.totalorder %s174, %s175
      %p186 = scmp.eq.s32.totalorder %s17, 0
      %p187 = por %p185, %p186
      %p188 = scmp.ne.s32.totalorder %s174, %s175
      %p189 = scmp.eq.s32.totalorder %s18, 3
      %p190 = por %p188, %p189
      %p192 = scmp.ne.s32.totalorder %s175, %s191
      %p193 = scmp.eq.s32.totalorder %s18, 0
      %p194 = por %p192, %p193
      %p195 = scmp.le.s32.totalorder 1, %s12
      %p196 = scmp.lt.s32.totalorder %s12, 5
      %p197 = pnand %p195, %p196
      %p198 = pneg %p197
      // Predicated region
      $region9: #{conv2d_transpose_forward.1} parent=5 // pred_check
        _
      $region10: #{conv2d_transpose_forward.1} parent=5 // pred_check_branch
        %200 = sbr.rel (%p197) target = $region12
      $region11: #{conv2d_transpose_forward.1} parent=5 // pred_region
        %s201 = ssub.s32 %s12, 1
        // Predicated region
        $region13: #{conv2d_transpose_forward.1} parent=11 // pred_check
          %p202 = pneg %p75
        $region14: #{conv2d_transpose_forward.1} parent=11 // pred_check_branch
          %204 = sbr.rel (%p202) target = $region16
        $region15: #{conv2d_transpose_forward.1} parent=11 // pred_region
          _
        $region16: #{conv2d_transpose_forward.1} parent=11 // pred_fallthru
          _
      $region12: #{conv2d_transpose_forward.1} parent=5 // pred_fallthru
        _
      %p205 = scmp.lt.s32.totalorder %s12, 4
      // Predicated region
      $region17: #{conv2d_transpose_forward.1} parent=5 // pred_check
        %p206 = pneg %p205
      $region18: #{conv2d_transpose_forward.1} parent=5 // pred_check_branch
        %208 = sbr.rel (%p206) target = $region20
      $region19: #{conv2d_transpose_forward.1} parent=5 // pred_region
        // Predicated region
        $region21: #{conv2d_transpose_forward.1} parent=19 // pred_check
          %p209 = pneg %p48
        $region22: #{conv2d_transpose_forward.1} parent=19 // pred_check_branch
          %211 = sbr.rel (%p209) target = $region24
        $region23: #{conv2d_transpose_forward.1} parent=19 // pred_region
          %s212 = sand.u32 %s38, 1
          %s213 = sand.u32 %s38, 1
          %s214 = smul.addr %s213, 8
          %s215 = scalar_lea.vmem [#allocation2], %s214
          %s216 = smul.u32 %s19, 2
          %s217 = sadd.s32 %s216, %s20
          %s218 = smul.addr %s217, 4
          %s219 = scalar_lea.vmem %s0, %s218
          // Predicated region
          $region25: #{conv2d_transpose_forward.1} parent=23 // pred_check
            _
          $region26: #{conv2d_transpose_forward.1} parent=23 // pred_check_branch
            %221 = sbr.rel (0) target = $region28
          $region27: #{conv2d_transpose_forward.1} parent=23 // pred_region
            // Predicated region
            $region29: #{conv2d_transpose_forward.1} parent=27 // pred_check
              _
            $region30: #{conv2d_transpose_forward.1} parent=27 // pred_check_branch
              %223 = sbr.rel target = $region32
            $region31: #{conv2d_transpose_forward.1} parent=27 // pred_region
              // Predicated region
              $region44: #{conv2d_transpose_forward.1} parent=31 // pred_check
                _
              $region45: #{conv2d_transpose_forward.1} parent=31 // pred_check_branch
                %240 = sbr.rel (0) target = $region47
              $region46: #{conv2d_transpose_forward.1} parent=31 // pred_region
                loop: start=0, step=1, limit=1
                $region48: #{conv2d_transpose_forward.1} parent=46 // loop_pre_header
                  _
                $region49: #{conv2d_transpose_forward.1} parent=46 // loop_header
                  %s242 = sphi 0, %s246
                  %p243 = scmp.ge.s32.totalorder %s242, 1
                  %s247 = sphi %s219, %s219
                  %s248 = sphi %s215, %s215
                $region50: #{conv2d_transpose_forward.1} parent=46 // loop_header_branch
                  %245 = sbr.rel (%p243) target = $region54
                $region51: #{conv2d_transpose_forward.1} parent=46 // loop_body
                  _
                $region52: #{conv2d_transpose_forward.1} parent=46 // loop_footer
                  %s246 = sadd.s32 1, %s242
                $region53: #{conv2d_transpose_forward.1} parent=46 // loop_footer_branch
                  %241 = sbr.rel target = $region49
                $region54: #{conv2d_transpose_forward.1} parent=46 // loop_exit
                  _
                loop: start=0, step=1, limit=1
                $region55: #{conv2d_transpose_forward.1} parent=46 // loop_pre_header
                  _
                $region56: #{conv2d_transpose_forward.1} parent=46 // loop_header
                  %s251 = sphi 0, %s255
                  %p252 = scmp.ge.s32.totalorder %s251, 1
                  %s256 = sphi %s219, %s219
                  %s257 = sphi %s215, %s215
                $region57: #{conv2d_transpose_forward.1} parent=46 // loop_header_branch
                  %254 = sbr.rel (%p252) target = $region61
                $region58: #{conv2d_transpose_forward.1} parent=46 // loop_body
                  %v258 = vld [vmem:[%s256] sm:$0xf]
                  %259 = vst [vmem:[%s257] sm:$0xf] %v258
                  %v260 = vld [vmem:[%s256 + $0x10] sm:$0xf]
                  %261 = vst [vmem:[%s257 + $0x4] sm:$0xf] %v260
                $region59: #{conv2d_transpose_forward.1} parent=46 // loop_footer
                  %s255 = sadd.s32 1, %s251
                $region60: #{conv2d_transpose_forward.1} parent=46 // loop_footer_branch
                  %250 = sbr.rel target = $region56
                $region61: #{conv2d_transpose_forward.1} parent=46 // loop_exit
                  _
              $region47: #{conv2d_transpose_forward.1} parent=31 // pred_fallthru
                _
            $region32: #{conv2d_transpose_forward.1} parent=27 // pred_fallthru
              _
            // Predicated region
            $region33: #{conv2d_transpose_forward.1} parent=27 // pred_check
              _
            $region34: #{conv2d_transpose_forward.1} parent=27 // pred_check_branch
              %225 = sbr.rel (0) target = $region36
            $region35: #{conv2d_transpose_forward.1} parent=27 // pred_region
              loop: start=0, step=1, limit=1
              $region37: #{conv2d_transpose_forward.1} parent=35 // loop_pre_header
                _
              $region38: #{conv2d_transpose_forward.1} parent=35 // loop_header
                %s228 = sphi 0, %s232
                %p229 = scmp.ge.s32.totalorder %s228, 1
                %s233 = sphi %s219, %s219
                %s234 = sphi %s215, %s215
              $region39: #{conv2d_transpose_forward.1} parent=35 // loop_header_branch
                %231 = sbr.rel (%p229) target = $region43
              $region40: #{conv2d_transpose_forward.1} parent=35 // loop_body
                %v235 = vld [vmem:[%s233] sm:$0xf]
                %236 = vst [vmem:[%s234] sm:$0xf] %v235
                %v237 = vld [vmem:[%s233 + $0x10] sm:$0xf]
                %238 = vst [vmem:[%s234 + $0x4] sm:$0xf] %v237
              $region41: #{conv2d_transpose_forward.1} parent=35 // loop_footer
                %s232 = sadd.s32 1, %s228
              $region42: #{conv2d_transpose_forward.1} parent=35 // loop_footer_branch
                %227 = sbr.rel target = $region38
              $region43: #{conv2d_transpose_forward.1} parent=35 // loop_exit
                _
            $region36: #{conv2d_transpose_forward.1} parent=27 // pred_fallthru
              _
          $region28: #{conv2d_transpose_forward.1} parent=23 // pred_fallthru
            _
          %262 = vnop
        $region24: #{conv2d_transpose_forward.1} parent=19 // pred_fallthru
          _
        // Predicated region
        $region62: #{conv2d_transpose_forward.1} parent=19 // pred_check
          %p263 = pneg %p99
        $region63: #{conv2d_transpose_forward.1} parent=19 // pred_check_branch
          %265 = sbr.rel (%p263) target = $region65
        $region64: #{conv2d_transpose_forward.1} parent=19 // pred_region
          %s266 = smul.u32 %s19, 2
          %s267 = sadd.s32 %s266, %s20
          %s268 = smul.u32 16, %s267
          %p269 = scmp.lt.s32.totalorder %s268, 63
          %s270 = scalar_select %p269, %s268, 63
          %s271 = smul.addr %s270, 8
          %s272 = scalar_lea.vmem %s2, %s271
          %s273 = smul.u32 %s19, 2
          %s274 = sadd.s32 %s273, %s20
          %s275 = smul.u32 16, %s274
        $region65: #{conv2d_transpose_forward.1} parent=19 // pred_fallthru
          _
      $region20: #{conv2d_transpose_forward.1} parent=5 // pred_fallthru
        _
      %p276 = scmp.le.s32.totalorder 1, %s12
      %p277 = scmp.lt.s32.totalorder %s12, 5
      %p278 = pnand %p276, %p277
      %p279 = pneg %p278
      // Predicated region
      $region66: #{conv2d_transpose_forward.1} parent=5 // pred_check
        _
      $region67: #{conv2d_transpose_forward.1} parent=5 // pred_check_branch
        %281 = sbr.rel (%p278) target = $region69
      $region68: #{conv2d_transpose_forward.1} parent=5 // pred_region
        %s282 = ssub.s32 %s12, 1
        %s283 = sand.u32 %s41, 1
        %s284 = sand.u32 %s41, 1
        %s285 = smul.addr %s284, 8
        %s286 = scalar_lea.vmem [#allocation2], %s285
        // Predicated region
        $region70: #{conv2d_transpose_forward.1} parent=68 // pred_check
          %p287 = pneg %p54
        $region71: #{conv2d_transpose_forward.1} parent=68 // pred_check_branch
          %289 = sbr.rel (%p287) target = $region73
        $region72: #{conv2d_transpose_forward.1} parent=68 // pred_region
          _
        $region73: #{conv2d_transpose_forward.1} parent=68 // pred_fallthru
          _
        %s290 = sand.u32 %s41, 1
        %s291 = sand.u32 %s41, 1
        %s292 = smul.addr %s291, 8
        %s293 = scalar_lea.vmem [#allocation2], %s292
        %p294 = pneg %p54
        %p295 = pneg %p51
        %p296 = pneg %p75
        %p297 = pneg %p72
        %s298 = smul.u32 %s21, 2
        %s299 = sadd.s32 %s298, %s22
        %s300 = smul.u32 16, %s299
        %p301 = scmp.lt.s32.totalorder %s300, 63
        %s302 = scalar_select %p301, %s300, 63
        %s303 = smul.addr %s302, 8
        %s304 = scalar_lea.vmem %s2, %s303
        %p305 = pneg %p105
        %p306 = pneg %p102
        %p307 = pneg %p135
        %p308 = pneg %p132
        %s309 = sand.u32 %s122, 1
        %s310 = sand.u32 %s122, 1
        %s311 = smul.addr %s310, 16
        %s312 = scalar_lea.vmem [#allocation3], %s311
        %p313 = pneg %p161
        %p314 = pneg %p158
        %p315 = scmp.lt.s32.totalorder %s21, 1
        %s316 = scalar_select %p315, %s21, 1
        %s317 = smul.addr %s316, 4
        %s318 = smul.addr %s317, 8
        %s319 = scalar_lea.vmem %s4, %s318
        %p320 = pneg %p187
        %p321 = pneg %p184
        %p322 = scmp.lt.s32.totalorder %s21, 1
        %s323 = scalar_select %p322, %s21, 1
        %s324 = smul.addr %s323, 4
        %s325 = smul.addr %s324, 8
        %s326 = scalar_lea.vmem %s5, %s325
        %s327 = smul.u32 %s21, 2
        %s328 = sadd.s32 %s327, %s22
        %s329 = smul.u32 %s21, 2
        %s330 = sadd.s32 %s329, %s22
        %s331 = smul.u32 16, %s330
        %p332 = scmp.lt.s32.totalorder %s331, 63
        %s333 = scalar_select %p332, %s331, 63
        %s334 = smul.addr %s333, 8
        %s335 = scalar_lea.vmem %s2, %s334
        %s336 = smul.u32 %s21, 2
        %s337 = sadd.s32 %s336, %s22
        %s338 = smul.u32 16, %s337
        %s339 = smul.u32 %s21, 2
        %s340 = sadd.s32 %s339, %s22
        %p341 = scmp.lt.s32.totalorder %s21, 1
        %s342 = scalar_select %p341, %s21, 1
        %s343 = smul.addr %s342, 4
        %s344 = smul.addr %s343, 8
        %s345 = scalar_lea.vmem %s4, %s344
        %p346 = scmp.lt.s32.totalorder %s21, 1
        %s347 = scalar_select %p346, %s21, 1
        %s348 = smul.addr %s347, 4
        %s349 = smul.addr %s348, 8
        %s350 = scalar_lea.vmem %s5, %s349
        %v352 = vld [vmem:[%s1] sm:$0xf]
        %v353 = vld [vmem:[%s1 + $0x4] sm:$0xf]
        %v354 = vld [vmem:[%s1 + $0x8] sm:$0xf]
        %v355 = vld [vmem:[%s1 + $0xc] sm:$0xf]
        %v356 = vld [vmem:[%s286] sm:$0xf]
        %v357 = vld [vmem:[%s286 + $0x4] sm:$0xf]
        %v362 = vunpack.c.l.b16 %v352
        %v363 = vunpack.c.l.b16 %v353
        %v364 = vunpack.c.l.b16 %v354
        %v365 = vunpack.c.l.b16 %v355
        %v366 = vpack.c.b16 %v363, %v362
        %v367 = vpack.c.b16 %v365, %v364
        %v370 = vunpack.c.l.b16 %v356
        %v371 = vunpack.c.l.b16 %v357
        %v372 = vpack.c.b16 %v371, %v370
        %vm374 = vcmask 130048
        %v376 = vsel %vm374, %v366, 0
        %v379 = vsel %vm374, %v367, 0
        %381 = vmatprep.subr.bf16.mxu0 0
        %382 = vmatpush1.bf16.msra.mxu0 %v372
        %383 = vmatprep.subr.bf16.mxu0 0
        %384 = vmatpush1.bf16.msra.mxu0 0
        %385 = vmatprep.subr.bf16.mxu0 0
        %386 = vmatpush1.bf16.msra.mxu0 0
        %387 = vmatprep.subr.bf16.mxu0 0
        %388 = vmatpush1.bf16.msra.mxu0 0
        %389 = vmatprep.subr.bf16.mxu0 0
        %390 = vmatpush1.bf16.msra.mxu0 0
        %391 = vmatprep.subr.bf16.mxu0 0
        %392 = vmatpush1.bf16.msra.mxu0 0
        %393 = vmatprep.subr.bf16.mxu0 0
        %394 = vmatpush1.bf16.msra.mxu0 0
        %395 = vmatprep.subr.bf16.mxu0 0
        %396 = vmatpush1.bf16.msra.mxu0 0
        %397 = vmatprep.subr.bf16.mxu0 0
        %398 = vmatpush1.bf16.msra.mxu0 0
        %399 = vmatprep.subr.bf16.mxu0 0
        %400 = vmatpush1.bf16.msra.mxu0 0
        %401 = vmatprep.subr.bf16.mxu0 0
        %402 = vmatpush1.bf16.msra.mxu0 0
        %403 = vmatprep.subr.bf16.mxu0 0
        %404 = vmatpush1.bf16.msra.mxu0 0
        %405 = vmatprep.subr.bf16.mxu0 0
        %406 = vmatpush1.bf16.msra.mxu0 0
        %407 = vmatprep.subr.bf16.mxu0 0
        %408 = vmatpush1.bf16.msra.mxu0 0
        %409 = vmatprep.subr.bf16.mxu0 0
        %410 = vmatpush1.bf16.msra.mxu0 0
        %411 = vmatprep.subr.bf16.mxu0 0
        %412 = vmatpush1.bf16.msra.mxu0 0
        %413 = vmatprep.mubr.bf16.mxu0 0
        %414 = vmatmul.mubr.bf16.gmra.mrb[0].mxu0 %v376
        %v415 = vpop.f32.mrb[0].mxu0
        %v416 = vadd.f32 0.0, %v415
        %v417 = vpop.f32.mrb[0].mxu0
        %v418 = vpop.f32.mrb[0].mxu0
        %v419 = vadd.f32 0.0, %v418
        %v420 = vpop.f32.mrb[0].mxu0
        %421 = vmatprep.mubr.bf16.mxu0 0
        %422 = vmatmul.mubr.bf16.gmra.mrb[0].mxu0 %v379
        %v423 = vpop.f32.mrb[0].mxu0
        %v424 = vadd.f32 0.0, %v423
        %v425 = vpop.f32.mrb[0].mxu0
        %v426 = vpop.f32.mrb[0].mxu0
        %v427 = vadd.f32 0.0, %v426
        %v428 = vpop.f32.mrb[0].mxu0
        %429 = vdwg.mxu0
        %v430 = vpack.c.bf16 %v419, %v416
        %v431 = vpack.c.bf16 %v427, %v424
        %v434 = vunpack.c.l.b16 %v430
        %v435 = vunpack.c.h.b16 %v430
        %v436 = vunpack.c.l.b16 %v431
        %v437 = vunpack.c.h.b16 %v431
        %v438 = vpack.c.b16 %v434, %v434
        %v439 = vpack.c.b16 %v435, %v435
        %v440 = vpack.c.b16 %v436, %v436
        %v441 = vpack.c.b16 %v437, %v437
        %446 = vst [vmem:[%s312] sm:$0xf] %v438
        %447 = vst [vmem:[%s312 + $0x4] sm:$0xf] %v439
        %448 = vst [vmem:[%s312 + $0x8] sm:$0xf] %v440
        %449 = vst [vmem:[%s312 + $0xc] sm:$0xf] %v441
        %p450 = scmp.eq.s32.totalorder %s22, 0
        // Predicated region
        $region74: #{conv2d_transpose_forward.1} parent=68 // pred_check
          %p451 = pneg %p450
        $region75: #{conv2d_transpose_forward.1} parent=68 // pred_check_branch
          %453 = sbr.rel (%p451) target = $region77
        $region76: #{conv2d_transpose_forward.1} parent=68 // pred_region
          %vm454 = vcmask 31744
          %455 = vst.msk [vmem:[%s345] sm:$0xff] %vm454, 0.0
          %456 = vst.msk [vmem:[%s345 + $0x8] sm:$0xff] %vm454, 0.0
          %457 = vst.msk [vmem:[%s345 + $0x10] sm:$0xff] %vm454, 0.0
          %458 = vst.msk [vmem:[%s345 + $0x18] sm:$0xff] %vm454, 0.0
          %459 = vst.msk [vmem:[%s350] sm:$0xff] %vm454, 0.0
          %460 = vst.msk [vmem:[%s350 + $0x8] sm:$0xff] %vm454, 0.0
          %461 = vst.msk [vmem:[%s350 + $0x10] sm:$0xff] %vm454, 0.0
          %462 = vst.msk [vmem:[%s350 + $0x18] sm:$0xff] %vm454, 0.0
        $region77: #{conv2d_transpose_forward.1} parent=68 // pred_fallthru
          _
        %v463 = vld [vmem:[%s335] sm:$0xff]
        %v464 = vld [vmem:[%s335 + $0x8] sm:$0xff]
        %v465 = vld [vmem:[%s335 + $0x10] sm:$0xff]
        %v466 = vld [vmem:[%s335 + $0x18] sm:$0xff]
        %v467 = vld [vmem:[%s335 + $0x20] sm:$0xff]
        %v468 = vld [vmem:[%s335 + $0x28] sm:$0xff]
        %v469 = vld [vmem:[%s335 + $0x30] sm:$0xff]
        %v470 = vld [vmem:[%s335 + $0x38] sm:$0xff]
        %v471 = vld [vmem:[%s335 + $0x40] sm:$0xff]
        %v472 = vld [vmem:[%s335 + $0x48] sm:$0xff]
        %v473 = vld [vmem:[%s335 + $0x50] sm:$0xff]
        %v474 = vld [vmem:[%s335 + $0x58] sm:$0xff]
        %v475 = vld [vmem:[%s335 + $0x60] sm:$0xff]
        %v476 = vld [vmem:[%s335 + $0x68] sm:$0xff]
        %v477 = vld [vmem:[%s335 + $0x70] sm:$0xff]
        %v478 = vld [vmem:[%s335 + $0x78] sm:$0xff]
        %v479 = vld [vmem:[%s345] sm:$0xff]
        %v480 = vld [vmem:[%s345 + $0x8] sm:$0xff]
        %v481 = vld [vmem:[%s345 + $0x10] sm:$0xff]
        %v482 = vld [vmem:[%s345 + $0x18] sm:$0xff]
        %483 = vmatprep.subr.mxu0 0.0
        %484 = vmatpush1.msra.mxu0 %v463
        %485 = vmatprep.subr.mxu0 0.0
        %486 = vmatpush1.msra.mxu0 %v464
        %487 = vmatprep.subr.mxu0 0.0
        %488 = vmatpush1.msra.mxu0 %v465
        %489 = vmatprep.subr.mxu0 0.0
        %490 = vmatpush1.msra.mxu0 %v466
        %491 = vmatprep.subr.mxu0 0.0
        %492 = vmatpush1.msra.mxu0 %v467
        %493 = vmatprep.subr.mxu0 0.0
        %494 = vmatpush1.msra.mxu0 %v468
        %495 = vmatprep.subr.mxu0 0.0
        %496 = vmatpush1.msra.mxu0 %v469
        %497 = vmatprep.subr.mxu0 0.0
        %498 = vmatpush1.msra.mxu0 %v470
        %499 = vmatprep.subr.mxu0 0.0
        %500 = vmatpush1.msra.mxu0 %v471
        %501 = vmatprep.subr.mxu0 0.0
        %502 = vmatpush1.msra.mxu0 %v472
        %503 = vmatprep.subr.mxu0 0.0
        %504 = vmatpush1.msra.mxu0 %v473
        %505 = vmatprep.subr.mxu0 0.0
        %506 = vmatpush1.msra.mxu0 %v474
        %507 = vmatprep.subr.mxu0 0.0
        %508 = vmatpush1.msra.mxu0 %v475
        %509 = vmatprep.subr.mxu0 0.0
        %510 = vmatpush1.msra.mxu0 %v476
        %511 = vmatprep.subr.mxu0 0.0
        %512 = vmatpush1.msra.mxu0 %v477
        %513 = vmatprep.subr.mxu0 0.0
        %514 = vmatpush1.msra.mxu0 %v478
        %515 = vmatprep.subr.mxu0 0.0
        %516 = vmatpush1.msra.mxu0 0.0
        %517 = vmatprep.subr.mxu0 0.0
        %518 = vmatpush1.msra.mxu0 0.0
        %519 = vmatprep.subr.mxu0 0.0
        %520 = vmatpush1.msra.mxu0 0.0
        %521 = vmatprep.subr.mxu0 0.0
        %522 = vmatpush1.msra.mxu0 0.0
        %523 = vmatprep.subr.mxu0 0.0
        %524 = vmatpush1.msra.mxu0 0.0
        %525 = vmatprep.subr.mxu0 0.0
        %526 = vmatpush1.msra.mxu0 0.0
        %527 = vmatprep.subr.mxu0 0.0
        %528 = vmatpush1.msra.mxu0 0.0
        %529 = vmatprep.subr.mxu0 0.0
        %530 = vmatpush1.msra.mxu0 0.0
        %531 = vmatprep.subr.mxu0 0.0
        %532 = vmatpush1.msra.mxu0 0.0
        %533 = vmatprep.subr.mxu0 0.0
        %534 = vmatpush1.msra.mxu0 0.0
        %535 = vmatprep.subr.mxu0 0.0
        %536 = vmatpush1.msra.mxu0 0.0
        %537 = vmatprep.subr.mxu0 0.0
        %538 = vmatpush1.msra.mxu0 0.0
        %539 = vmatprep.subr.mxu0 0.0
        %540 = vmatpush1.msra.mxu0 0.0
        %541 = vmatprep.subr.mxu0 0.0
        %542 = vmatpush1.msra.mxu0 0.0
        %543 = vmatprep.subr.mxu0 0.0
        %544 = vmatpush1.msra.mxu0 0.0
        %545 = vmatprep.subr.mxu0 0.0
        %546 = vmatpush1.msra.mxu0 0.0
        %547 = vmatprep.mubr.f32.mxu0 0.0
        %548 = vmatmul.mubr.f32.gmra.mrb[0].mxu0 %v416
        %v549 = vpop.f32.mrb[0].mxu0
        %v550 = vadd.f32 0.0, %v549
        %v551 = vpop.f32.mrb[0].mxu0
        %552 = vmatprep.mubr.f32.mxu0 0.0
        %553 = vmatmul.mubr.f32.gmra.mrb[0].mxu0 %v419
        %v554 = vpop.f32.mrb[0].mxu0
        %v555 = vadd.f32 0.0, %v554
        %v556 = vpop.f32.mrb[0].mxu0
        %557 = vmatprep.mubr.f32.mxu0 0.0
        %558 = vmatmul.mubr.f32.gmra.mrb[0].mxu0 %v424
        %v559 = vpop.f32.mrb[0].mxu0
        %v560 = vadd.f32 0.0, %v559
        %v561 = vpop.f32.mrb[0].mxu0
        %562 = vmatprep.mubr.f32.mxu0 0.0
        %563 = vmatmul.mubr.f32.gmra.mrb[0].mxu0 %v427
        %v564 = vpop.f32.mrb[0].mxu0
        %v565 = vadd.f32 0.0, %v564
        %v566 = vpop.f32.mrb[0].mxu0
        %567 = vdwg.mxu0
        %v568 = vadd.f32 %v479, %v550
        %v569 = vadd.f32 %v480, %v555
        %v570 = vadd.f32 %v481, %v560
        %v571 = vadd.f32 %v482, %v565
        %vm572 = vcmask 31744
        %573 = vst.msk [vmem:[%s345] sm:$0xff] %vm572, %v568
        %574 = vst.msk [vmem:[%s345 + $0x8] sm:$0xff] %vm572, %v569
        %575 = vst.msk [vmem:[%s345 + $0x10] sm:$0xff] %vm572, %v570
        %576 = vst.msk [vmem:[%s345 + $0x18] sm:$0xff] %vm572, %v571
        %v577 = vld [vmem:[%s350] sm:$0xff]
        %v578 = vld [vmem:[%s350 + $0x8] sm:$0xff]
        %v579 = vld [vmem:[%s350 + $0x10] sm:$0xff]
        %v580 = vld [vmem:[%s350 + $0x18] sm:$0xff]
        %v581 = vmul.f32 %v416, %v416
        %v582 = vmul.f32 %v419, %v419
        %v583 = vmul.f32 %v424, %v424
        %v584 = vmul.f32 %v427, %v427
        %585 = vmatprep.subr.mxu0 0.0
        %586 = vmatpush1.msra.mxu0 %v463
        %587 = vmatprep.subr.mxu0 0.0
        %588 = vmatpush1.msra.mxu0 %v464
        %589 = vmatprep.subr.mxu0 0.0
        %590 = vmatpush1.msra.mxu0 %v465
        %591 = vmatprep.subr.mxu0 0.0
        %592 = vmatpush1.msra.mxu0 %v466
        %593 = vmatprep.subr.mxu0 0.0
        %594 = vmatpush1.msra.mxu0 %v467
        %595 = vmatprep.subr.mxu0 0.0
        %596 = vmatpush1.msra.mxu0 %v468
        %597 = vmatprep.subr.mxu0 0.0
        %598 = vmatpush1.msra.mxu0 %v469
        %599 = vmatprep.subr.mxu0 0.0
        %600 = vmatpush1.msra.mxu0 %v470
        %601 = vmatprep.subr.mxu0 0.0
        %602 = vmatpush1.msra.mxu0 %v471
        %603 = vmatprep.subr.mxu0 0.0
        %604 = vmatpush1.msra.mxu0 %v472
        %605 = vmatprep.subr.mxu0 0.0
        %606 = vmatpush1.msra.mxu0 %v473
        %607 = vmatprep.subr.mxu0 0.0
        %608 = vmatpush1.msra.mxu0 %v474
        %609 = vmatprep.subr.mxu0 0.0
        %610 = vmatpush1.msra.mxu0 %v475
        %611 = vmatprep.subr.mxu0 0.0
        %612 = vmatpush1.msra.mxu0 %v476
        %613 = vmatprep.subr.mxu0 0.0
        %614 = vmatpush1.msra.mxu0 %v477
        %615 = vmatprep.subr.mxu0 0.0
        %616 = vmatpush1.msra.mxu0 %v478
        %617 = vmatprep.subr.mxu0 0.0
        %618 = vmatpush1.msra.mxu0 0.0
        %619 = vmatprep.subr.mxu0 0.0
        %620 = vmatpush1.msra.mxu0 0.0
        %621 = vmatprep.subr.mxu0 0.0
        %622 = vmatpush1.msra.mxu0 0.0
        %623 = vmatprep.subr.mxu0 0.0
        %624 = vmatpush1.msra.mxu0 0.0
        %625 = vmatprep.subr.mxu0 0.0
        %626 = vmatpush1.msra.mxu0 0.0
        %627 = vmatprep.subr.mxu0 0.0
        %628 = vmatpush1.msra.mxu0 0.0
        %629 = vmatprep.subr.mxu0 0.0
        %630 = vmatpush1.msra.mxu0 0.0
        %631 = vmatprep.subr.mxu0 0.0
        %632 = vmatpush1.msra.mxu0 0.0
        %633 = vmatprep.subr.mxu0 0.0
        %634 = vmatpush1.msra.mxu0 0.0
        %635 = vmatprep.subr.mxu0 0.0
        %636 = vmatpush1.msra.mxu0 0.0
        %637 = vmatprep.subr.mxu0 0.0
        %638 = vmatpush1.msra.mxu0 0.0
        %639 = vmatprep.subr.mxu0 0.0
        %640 = vmatpush1.msra.mxu0 0.0
        %641 = vmatprep.subr.mxu0 0.0
        %642 = vmatpush1.msra.mxu0 0.0
        %643 = vmatprep.subr.mxu0 0.0
        %644 = vmatpush1.msra.mxu0 0.0
        %645 = vmatprep.subr.mxu0 0.0
        %646 = vmatpush1.msra.mxu0 0.0
        %647 = vmatprep.subr.mxu0 0.0
        %648 = vmatpush1.msra.mxu0 0.0
        %649 = vmatprep.mubr.f32.mxu0 0.0
        %650 = vmatmul.mubr.f32.gmra.mrb[0].mxu0 %v581
        %v651 = vpop.f32.mrb[0].mxu0
        %v652 = vadd.f32 0.0, %v651
        %v653 = vpop.f32.mrb[0].mxu0
        %654 = vmatprep.mubr.f32.mxu0 0.0
        %655 = vmatmul.mubr.f32.gmra.mrb[0].mxu0 %v582
        %v656 = vpop.f32.mrb[0].mxu0
        %v657 = vadd.f32 0.0, %v656
        %v658 = vpop.f32.mrb[0].mxu0
        %659 = vmatprep.mubr.f32.mxu0 0.0
        %660 = vmatmul.mubr.f32.gmra.mrb[0].mxu0 %v583
        %v661 = vpop.f32.mrb[0].mxu0
        %v662 = vadd.f32 0.0, %v661
        %v663 = vpop.f32.mrb[0].mxu0
        %664 = vmatprep.mubr.f32.mxu0 0.0
        %665 = vmatmul.mubr.f32.gmra.mrb[0].mxu0 %v584
        %v666 = vpop.f32.mrb[0].mxu0
        %v667 = vadd.f32 0.0, %v666
        %v668 = vpop.f32.mrb[0].mxu0
        %669 = vdwg.mxu0
        %v670 = vadd.f32 %v577, %v652
        %v671 = vadd.f32 %v578, %v657
        %v672 = vadd.f32 %v579, %v662
        %v673 = vadd.f32 %v580, %v667
        %674 = vst.msk [vmem:[%s350] sm:$0xff] %vm572, %v670
        %675 = vst.msk [vmem:[%s350 + $0x8] sm:$0xff] %vm572, %v671
        %676 = vst.msk [vmem:[%s350 + $0x10] sm:$0xff] %vm572, %v672
        %677 = vst.msk [vmem:[%s350 + $0x18] sm:$0xff] %vm572, %v673
        %s678 = sand.u32 %s122, 1
        %s679 = sand.u32 %s122, 1
        %s680 = smul.addr %s679, 16
        %s681 = scalar_lea.vmem [#allocation3], %s680
        %p682 = scmp.lt.s32.totalorder %s21, 1
        %s683 = scalar_select %p682, %s21, 1
        %s684 = smul.addr %s683, 4
        %s685 = smul.addr %s684, 8
        %s686 = scalar_lea.vmem %s4, %s685
        %p687 = scmp.lt.s32.totalorder %s21, 1
        %s688 = scalar_select %p687, %s21, 1
        %s689 = smul.addr %s688, 4
        %s690 = smul.addr %s689, 8
        %s691 = scalar_lea.vmem %s5, %s690
        // Predicated region
        $region78: #{conv2d_transpose_forward.1} parent=68 // pred_check
          %p692 = pneg %p132
        $region79: #{conv2d_transpose_forward.1} parent=68 // pred_check_branch
          %694 = sbr.rel (%p692) target = $region81
        $region80: #{conv2d_transpose_forward.1} parent=68 // pred_region
          %s695 = smul.u32 %s21, 2
          %s696 = sadd.s32 %s695, %s22
          %s697 = smul.addr %s696, 4
          %s698 = scalar_lea.vmem %s3, %s697
          // Predicated region
          $region82: #{conv2d_transpose_forward.1} parent=80 // pred_check
            _
          $region83: #{conv2d_transpose_forward.1} parent=80 // pred_check_branch
            %700 = sbr.rel (0) target = $region85
          $region84: #{conv2d_transpose_forward.1} parent=80 // pred_region
            // Predicated region
            $region86: #{conv2d_transpose_forward.1} parent=84 // pred_check
              _
            $region87: #{conv2d_transpose_forward.1} parent=84 // pred_check_branch
              %702 = sbr.rel target = $region89
            $region88: #{conv2d_transpose_forward.1} parent=84 // pred_region
              // Predicated region
              $region101: #{conv2d_transpose_forward.1} parent=88 // pred_check
                _
              $region102: #{conv2d_transpose_forward.1} parent=88 // pred_check_branch
                %723 = sbr.rel (0) target = $region104
              $region103: #{conv2d_transpose_forward.1} parent=88 // pred_region
                loop: start=0, step=1, limit=1
                $region105: #{conv2d_transpose_forward.1} parent=103 // loop_pre_header
                  _
                $region106: #{conv2d_transpose_forward.1} parent=103 // loop_header
                  %s725 = sphi 0, %s729
                  %p726 = scmp.ge.s32.totalorder %s725, 1
                  %s730 = sphi %s681, %s681
                  %s731 = sphi %s698, %s698
                $region107: #{conv2d_transpose_forward.1} parent=103 // loop_header_branch
                  %728 = sbr.rel (%p726) target = $region111
                $region108: #{conv2d_transpose_forward.1} parent=103 // loop_body
                  _
                $region109: #{conv2d_transpose_forward.1} parent=103 // loop_footer
                  %s729 = sadd.s32 1, %s725
                $region110: #{conv2d_transpose_forward.1} parent=103 // loop_footer_branch
                  %724 = sbr.rel target = $region106
                $region111: #{conv2d_transpose_forward.1} parent=103 // loop_exit
                  _
                loop: start=0, step=1, limit=1
                $region112: #{conv2d_transpose_forward.1} parent=103 // loop_pre_header
                  _
                $region113: #{conv2d_transpose_forward.1} parent=103 // loop_header
                  %s734 = sphi 0, %s738
                  %p735 = scmp.ge.s32.totalorder %s734, 1
                  %s739 = sphi %s681, %s681
                  %s740 = sphi %s698, %s698
                $region114: #{conv2d_transpose_forward.1} parent=103 // loop_header_branch
                  %737 = sbr.rel (%p735) target = $region118
                $region115: #{conv2d_transpose_forward.1} parent=103 // loop_body
                  %v741 = vld [vmem:[%s739] sm:$0xf]
                  %742 = vst [vmem:[%s740] sm:$0xf] %v741
                  %v743 = vld [vmem:[%s739 + $0x4] sm:$0xf]
                  %744 = vst [vmem:[%s740 + $0x10] sm:$0xf] %v743
                  %v745 = vld [vmem:[%s739 + $0x8] sm:$0xf]
                  %746 = vst [vmem:[%s740 + $0x20] sm:$0xf] %v745
                  %v747 = vld [vmem:[%s739 + $0xc] sm:$0xf]
                  %748 = vst [vmem:[%s740 + $0x30] sm:$0xf] %v747
                $region116: #{conv2d_transpose_forward.1} parent=103 // loop_footer
                  %s738 = sadd.s32 1, %s734
                $region117: #{conv2d_transpose_forward.1} parent=103 // loop_footer_branch
                  %733 = sbr.rel target = $region113
                $region118: #{conv2d_transpose_forward.1} parent=103 // loop_exit
                  _
              $region104: #{conv2d_transpose_forward.1} parent=88 // pred_fallthru
                _
            $region89: #{conv2d_transpose_forward.1} parent=84 // pred_fallthru
              _
            // Predicated region
            $region90: #{conv2d_transpose_forward.1} parent=84 // pred_check
              _
            $region91: #{conv2d_transpose_forward.1} parent=84 // pred_check_branch
              %704 = sbr.rel (0) target = $region93
            $region92: #{conv2d_transpose_forward.1} parent=84 // pred_region
              loop: start=0, step=1, limit=1
              $region94: #{conv2d_transpose_forward.1} parent=92 // loop_pre_header
                _
              $region95: #{conv2d_transpose_forward.1} parent=92 // loop_header
                %s707 = sphi 0, %s711
                %p708 = scmp.ge.s32.totalorder %s707, 1
                %s712 = sphi %s681, %s681
                %s713 = sphi %s698, %s698
              $region96: #{conv2d_transpose_forward.1} parent=92 // loop_header_branch
                %710 = sbr.rel (%p708) target = $region100
              $region97: #{conv2d_transpose_forward.1} parent=92 // loop_body
                %v714 = vld [vmem:[%s712] sm:$0xf]
                %715 = vst [vmem:[%s713] sm:$0xf] %v714
                %v716 = vld [vmem:[%s712 + $0x4] sm:$0xf]
                %717 = vst [vmem:[%s713 + $0x10] sm:$0xf] %v716
                %v718 = vld [vmem:[%s712 + $0x8] sm:$0xf]
                %719 = vst [vmem:[%s713 + $0x20] sm:$0xf] %v718
                %v720 = vld [vmem:[%s712 + $0xc] sm:$0xf]
                %721 = vst [vmem:[%s713 + $0x30] sm:$0xf] %v720
              $region98: #{conv2d_transpose_forward.1} parent=92 // loop_footer
                %s711 = sadd.s32 1, %s707
              $region99: #{conv2d_transpose_forward.1} parent=92 // loop_footer_branch
                %706 = sbr.rel target = $region95
              $region100: #{conv2d_transpose_forward.1} parent=92 // loop_exit
                _
            $region93: #{conv2d_transpose_forward.1} parent=84 // pred_fallthru
              _
          $region85: #{conv2d_transpose_forward.1} parent=80 // pred_fallthru
            _
          %749 = vnop
        $region81: #{conv2d_transpose_forward.1} parent=68 // pred_fallthru
          _
        // Predicated region
        $region119: #{conv2d_transpose_forward.1} parent=68 // pred_check
          %p750 = pneg %p158
        $region120: #{conv2d_transpose_forward.1} parent=68 // pred_check_branch
          %752 = sbr.rel (%p750) target = $region122
        $region121: #{conv2d_transpose_forward.1} parent=68 // pred_region
          _
        $region122: #{conv2d_transpose_forward.1} parent=68 // pred_fallthru
          _
        // Predicated region
        $region123: #{conv2d_transpose_forward.1} parent=68 // pred_check
          %p753 = pneg %p184
        $region124: #{conv2d_transpose_forward.1} parent=68 // pred_check_branch
          %755 = sbr.rel (%p753) target = $region126
        $region125: #{conv2d_transpose_forward.1} parent=68 // pred_region
          _
        $region126: #{conv2d_transpose_forward.1} parent=68 // pred_fallthru
          _
      $region69: #{conv2d_transpose_forward.1} parent=5 // pred_fallthru
        _
      %p756 = scmp.le.s32.totalorder 2, %s12
      // Predicated region
      $region127: #{conv2d_transpose_forward.1} parent=5 // pred_check
        %p757 = pneg %p756
      $region128: #{conv2d_transpose_forward.1} parent=5 // pred_check_branch
        %759 = sbr.rel (%p757) target = $region130
      $region129: #{conv2d_transpose_forward.1} parent=5 // pred_region
        %s760 = ssub.s32 %s12, 2
        // Predicated region
        $region131: #{conv2d_transpose_forward.1} parent=129 // pred_check
          %p761 = pneg %p138
        $region132: #{conv2d_transpose_forward.1} parent=129 // pred_check_branch
          %763 = sbr.rel (%p761) target = $region134
        $region133: #{conv2d_transpose_forward.1} parent=129 // pred_region
          %s764 = sand.u32 %s123, 1
          %s765 = sand.u32 %s123, 1
          %s766 = smul.addr %s765, 16
          %s767 = scalar_lea.vmem [#allocation3], %s766
        $region134: #{conv2d_transpose_forward.1} parent=129 // pred_fallthru
          _
        // Predicated region
        $region135: #{conv2d_transpose_forward.1} parent=129 // pred_check
          %p768 = pneg %p164
        $region136: #{conv2d_transpose_forward.1} parent=129 // pred_check_branch
          %770 = sbr.rel (%p768) target = $region138
        $region137: #{conv2d_transpose_forward.1} parent=129 // pred_region
          %p771 = scmp.lt.s32.totalorder %s23, 1
          %s772 = scalar_select %p771, %s23, 1
          %s773 = smul.addr %s772, 4
          %s774 = smul.addr %s773, 8
          %s775 = scalar_lea.vmem %s4, %s774
        $region138: #{conv2d_transpose_forward.1} parent=129 // pred_fallthru
          _
        // Predicated region
        $region139: #{conv2d_transpose_forward.1} parent=129 // pred_check
          %p776 = pneg %p190
        $region140: #{conv2d_transpose_forward.1} parent=129 // pred_check_branch
          %778 = sbr.rel (%p776) target = $region142
        $region141: #{conv2d_transpose_forward.1} parent=129 // pred_region
          %p779 = scmp.lt.s32.totalorder %s23, 1
          %s780 = scalar_select %p779, %s23, 1
          %s781 = smul.addr %s780, 4
          %s782 = smul.addr %s781, 8
          %s783 = scalar_lea.vmem %s5, %s782
        $region142: #{conv2d_transpose_forward.1} parent=129 // pred_fallthru
          _
      $region130: #{conv2d_transpose_forward.1} parent=5 // pred_fallthru
        _
    $region6: #{conv2d_transpose_forward.1} parent=1 // loop_footer
      %s16 = sadd.s32 1, %s12
    $region7: #{conv2d_transpose_forward.1} parent=1 // loop_footer_branch
      %11 = sbr.rel target = $region3
    $region8: #{conv2d_transpose_forward.1} parent=1 // loop_exit
      _

</llo_original>
